<compile_context>
chip_gen: v5e
topology: v5e:2x2
jax: 0.10.0
libtpu: 0.0.40
codegen_flags: <defaults>
</compile_context>

<pallas_src>
import jax
import jax.numpy as jnp
from jax.experimental import pallas as pl
from jax.experimental.pallas import tpu as pltpu


def _round_up(x, m):
    return ((x + m - 1) // m) * m


def irl_mlp_kernel(x_ref, w1_ref, b1_ref, w2_ref, b2_ref, w3_ref, b3_ref, o_ref):
    """One batch tile: relu(relu(relu(x@W1+b1)@W2+b2) . w3 + b3), lane-dense out."""
    x = x_ref[...]                                                   # (TB, F)

    # fc1 / fc2: real MXU matmuls, f32 accumulation.
    h1 = jnp.dot(x, w1_ref[...], preferred_element_type=jnp.float32) + b1_ref[...]
    h1 = jnp.maximum(h1, 0.0)                                        # (TB, F)

    h2 = jnp.dot(h1, w2_ref[...], preferred_element_type=jnp.float32) + b2_ref[...]
    h2 = jnp.maximum(h2, 0.0)                                        # (TB, H)

    # fc3: (TB, H) x (H,) -> scalar per row. Too small for the MXU -- do it on
    # the otherwise-idle VPU/XLU: broadcast-multiply by the w3 row, lane-reduce,
    # add the SMEM scalar bias.
    s = jnp.sum(h2 * w3_ref[...], axis=-1, keepdims=True) + b3_ref[0]  # (TB, 1)
    s = jnp.maximum(s, 0.0)

    # Lane-dense store: relayout the (TB, 1) column into a (1, TB) row so the
    # output block's last dim is a multiple of 128 (unmasked vector stores).
    o_ref[...] = jnp.transpose(s).astype(o_ref.dtype)                # (1, TB)


def irl_model_forward(x, params, tile_b=4096):
    """x: (B, F) float32. params: dict with pre-transposed (in, out) weights."""
    B, F = x.shape
    w1, b1 = params["w1"], params["b1"]      # (F, F), (1, F)
    w2, b2 = params["w2"], params["b2"]      # (F, H), (1, H)
    w3, b3 = params["w3"], params["b3"]      # (1, H), (1,)  -- fc3 row + scalar bias
    H = w2.shape[1]

    # Batch tile: large (amortizes ~0.35us/step grid overhead, keeps HBM DMA
    # pipelined), multiple of 128 (lane-dense output blocks), capped so tiny
    # batches don't over-pad. 2 buffers * tile_b*F*4B stays well under the
    # scoped-VMEM default on all of v5e/v6e/v7x.
    tb = max(128, min(tile_b, _round_up(B, 128)))
    b_pad = _round_up(B, tb)
    if b_pad != B:
        x = jnp.pad(x, ((0, b_pad - B), (0, 0)))

    grid = (b_pad // tb,)

    out_row = pl.pallas_call(
        irl_mlp_kernel,
        out_shape=jax.ShapeDtypeStruct((1, b_pad), jnp.float32),
        grid=grid,
        in_specs=[
            pl.BlockSpec((tb, F), lambda i: (i, 0)),            # x: streamed tiles
            pl.BlockSpec((F, F), lambda i: (0, 0)),             # w1: VMEM-resident
            pl.BlockSpec((1, F), lambda i: (0, 0)),             # b1: VMEM-resident
            pl.BlockSpec((F, H), lambda i: (0, 0)),             # w2: VMEM-resident
            pl.BlockSpec((1, H), lambda i: (0, 0)),             # b2: VMEM-resident
            pl.BlockSpec((1, H), lambda i: (0, 0)),             # w3 row: VMEM-resident
            pl.BlockSpec(memory_space=pltpu.MemorySpace.SMEM),  # b3: scalar in SMEM
        ],
        out_specs=pl.BlockSpec((1, tb), lambda i: (0, i)),      # lane-dense output row
        compiler_params=pltpu.CompilerParams(
            # Batch tiles are independent: lets v7x shard the grid over its
            # 2 TensorCores; harmless on single-TC v5e/v6e.
            dimension_semantics=("parallel",),
        ),
        cost_estimate=pl.CostEstimate(
            flops=2 * b_pad * (F * F + F * H + H),
            transcendentals=0,
            bytes_accessed=b_pad * F * 4 + b_pad * 4
            + 4 * (F * F + F + F * H + H + H + 1),
        ),
    )(x, w1, b1, w2, b2, w3, b3)

    # (1, B_pad) lane-dense slab -> (B, 1)
    return out_row.reshape(b_pad, 1)[:B]


def get_lambda(lamb):
    # torch.clamp(self.lamb, min=1.0) — trivial scalar glue, plain JAX.
    return jnp.maximum(lamb, 1.0)


def init_params(key, num_features):
    """Synthetic init matching the PyTorch module's shapes/distribution.

    PyTorch: W_l ~ N(1.0, 0.1); biases keep default Linear init
    (uniform(-1/sqrt(fan_in), 1/sqrt(fan_in))).
    fc1/fc2 weights stored transposed (in, out); fc3 kept as a (1, H) row.
    """
    F = num_features
    H = F // 2
    k = jax.random.split(key, 6)

    def wnorm(k_, shape):
        return (1.0 + 0.1 * jax.random.normal(k_, shape)).astype(jnp.float32)

    def bunif(k_, in_dim, shape):
        bound = 1.0 / jnp.sqrt(jnp.float32(in_dim))
        return jax.random.uniform(k_, shape, minval=-bound, maxval=bound).astype(jnp.float32)

    return {
        "w1": wnorm(k[0], (F, F)), "b1": bunif(k[1], F, (1, F)),
        "w2": wnorm(k[2], (F, H)), "b2": bunif(k[3], F, (1, H)),
        "w3": wnorm(k[4], (1, H)), "b3": bunif(k[5], H, (1,)),
        "lamb": jnp.array([1.24744], dtype=jnp.float32),
    }


if __name__ == "__main__":
    key = jax.random.PRNGKey(0)
    num_features = 32
    batch = 8

    k_x, k_p = jax.random.split(key)
    x = jax.random.normal(k_x, (batch, num_features), dtype=jnp.float32)
    params = init_params(k_p, num_features)

    out = irl_model_forward(x, params)
    out = jax.block_until_ready(out)

    # Pure-JAX reference (same math, no Pallas).
    h1 = jnp.maximum(x @ params["w1"] + params["b1"], 0.0)
    h2 = jnp.maximum(h1 @ params["w2"] + params["b2"], 0.0)
    ref = jnp.maximum(h2 @ params["w3"].T + params["b3"], 0.0)

    assert out.shape == (batch, 1)
    assert jnp.allclose(out, ref, atol=1e-4, rtol=1e-4)

    lam = jax.block_until_ready(get_lambda(params["lamb"]))
    assert float(lam[0]) >= 1.0

    print("KERNEL_OK")
</pallas_src>

<mosaic_0001>
module attributes {stable_mosaic.version = 11 : i64} {
  func.func @irl_mlp_kernel(%arg0: i32, %arg1: memref<128x32xf32, #tpu.memory_space<vmem>>, %arg2: memref<32x32xf32, #tpu.memory_space<vmem>>, %arg3: memref<1x32xf32, #tpu.memory_space<vmem>>, %arg4: memref<32x16xf32, #tpu.memory_space<vmem>>, %arg5: memref<1x16xf32, #tpu.memory_space<vmem>>, %arg6: memref<1x16xf32, #tpu.memory_space<vmem>>, %arg7: memref<1xf32, #tpu.memory_space<smem>>, %arg8: memref<1x128xf32, #tpu.memory_space<vmem>>) attributes {dimension_semantics = [#tpu.dimension_semantics<parallel>], iteration_bounds = array<i64: 1>, scalar_prefetch = 0 : i64, scratch_operands = 0 : i64, tpu.core_type = #tpu.core_type<tc>, window_params = [{transform_indices = @transform_0, window_bounds = array<i64: 128, 32>}, {pipeline_mode = #tpu.pipeline_mode<synchronous>, transform_indices = @transform_1, window_bounds = array<i64: 32, 32>}, {pipeline_mode = #tpu.pipeline_mode<synchronous>, transform_indices = @transform_2, window_bounds = array<i64: 1, 32>}, {pipeline_mode = #tpu.pipeline_mode<synchronous>, transform_indices = @transform_3, window_bounds = array<i64: 32, 16>}, {pipeline_mode = #tpu.pipeline_mode<synchronous>, transform_indices = @transform_4, window_bounds = array<i64: 1, 16>}, {pipeline_mode = #tpu.pipeline_mode<synchronous>, transform_indices = @transform_5, window_bounds = array<i64: 1, 16>}, {transform_indices = @transform_6, window_bounds = array<i64: 1>}, {transform_indices = @transform_7, window_bounds = array<i64: 1, 128>}]} {
    %c0 = arith.constant 0 : index
    %c0_0 = arith.constant 0 : index
    %0 = vector.load %arg1[%c0, %c0_0] : memref<128x32xf32, #tpu.memory_space<vmem>>, vector<128x32xf32>
    %c0_1 = arith.constant 0 : index
    %c0_2 = arith.constant 0 : index
    %1 = vector.load %arg2[%c0_1, %c0_2] : memref<32x32xf32, #tpu.memory_space<vmem>>, vector<32x32xf32>
    %cst = arith.constant dense<0.000000e+00> : vector<128x32xf32>
    %2 = tpu.matmul %0, %1, %cst {dimension_numbers = #tpu.dot_dimension_numbers<[1], [0], [0], [1], [0, 0, 1, 1], [], []>} : vector<128x32xf32>, vector<32x32xf32>, vector<128x32xf32> -> vector<128x32xf32>
    %c0_3 = arith.constant 0 : index
    %c0_4 = arith.constant 0 : index
    %3 = vector.load %arg3[%c0_3, %c0_4] : memref<1x32xf32, #tpu.memory_space<vmem>>, vector<1x32xf32>
    %4 = vector.broadcast %3 : vector<1x32xf32> to vector<128x32xf32>
    %5 = arith.addf %2, %4 : vector<128x32xf32>
    %cst_5 = arith.constant 0.000000e+00 : f32
    %6 = vector.broadcast %cst_5 : f32 to vector<128x32xf32>
    %7 = arith.maximumf %5, %6 : vector<128x32xf32>
    %c0_6 = arith.constant 0 : index
    %c0_7 = arith.constant 0 : index
    %8 = vector.load %arg4[%c0_6, %c0_7] : memref<32x16xf32, #tpu.memory_space<vmem>>, vector<32x16xf32>
    %cst_8 = arith.constant dense<0.000000e+00> : vector<128x16xf32>
    %9 = tpu.matmul %7, %8, %cst_8 {dimension_numbers = #tpu.dot_dimension_numbers<[1], [0], [0], [1], [0, 0, 1, 1], [], []>} : vector<128x32xf32>, vector<32x16xf32>, vector<128x16xf32> -> vector<128x16xf32>
    %c0_9 = arith.constant 0 : index
    %c0_10 = arith.constant 0 : index
    %10 = vector.load %arg5[%c0_9, %c0_10] : memref<1x16xf32, #tpu.memory_space<vmem>>, vector<1x16xf32>
    %11 = vector.broadcast %10 : vector<1x16xf32> to vector<128x16xf32>
    %12 = arith.addf %9, %11 : vector<128x16xf32>
    %cst_11 = arith.constant 0.000000e+00 : f32
    %13 = vector.broadcast %cst_11 : f32 to vector<128x16xf32>
    %14 = arith.maximumf %12, %13 : vector<128x16xf32>
    %c0_12 = arith.constant 0 : index
    %c0_13 = arith.constant 0 : index
    %15 = vector.load %arg6[%c0_12, %c0_13] : memref<1x16xf32, #tpu.memory_space<vmem>>, vector<1x16xf32>
    %16 = vector.broadcast %15 : vector<1x16xf32> to vector<128x16xf32>
    %17 = arith.mulf %14, %16 : vector<128x16xf32>
    %cst_14 = arith.constant dense<0.000000e+00> : vector<128xf32>
    %18 = vector.multi_reduction <add>, %17, %cst_14 [1] : vector<128x16xf32> to vector<128xf32>
    %19 = vector.shape_cast %18 : vector<128xf32> to vector<128x1xf32>
    %c0_15 = arith.constant 0 : index
    %20 = memref.load %arg7[%c0_15] : memref<1xf32, #tpu.memory_space<smem>>
    %21 = vector.broadcast %20 : f32 to vector<128x1xf32>
    %22 = arith.addf %19, %21 : vector<128x1xf32>
    %cst_16 = arith.constant 0.000000e+00 : f32
    %23 = vector.broadcast %cst_16 : f32 to vector<128x1xf32>
    %24 = arith.maximumf %22, %23 : vector<128x1xf32>
    %25 = tpu.transpose %24, [1, 0] : vector<128x1xf32> -> vector<1x128xf32>
    %c0_17 = arith.constant 0 : index
    %c0_18 = arith.constant 0 : index
    %26 = vector.load %arg8[%c0_17, %c0_18] : memref<1x128xf32, #tpu.memory_space<vmem>>, vector<1x128xf32>
    tpu.vector_store %arg8[%c0_17, %c0_18], %25 {strides = array<i32>} : memref<1x128xf32, #tpu.memory_space<vmem>>, vector<1x128xf32>,
    return
  }
  func.func @transform_0(%arg0: i32) -> (i32, i32) {
    %c0_i32 = arith.constant 0 : i32
    %c0_i32_0 = arith.constant 0 : i32
    return %arg0, %c0_i32 : i32, i32
  }
  func.func @transform_1(%arg0: i32) -> (i32, i32) {
    %c0_i32 = arith.constant 0 : i32
    %c0_i32_0 = arith.constant 0 : i32
    %c0_i32_1 = arith.constant 0 : i32
    return %c0_i32, %c0_i32_0 : i32, i32
  }
  func.func @transform_2(%arg0: i32) -> (i32, i32) {
    %c0_i32 = arith.constant 0 : i32
    %c0_i32_0 = arith.constant 0 : i32
    %c0_i32_1 = arith.constant 0 : i32
    return %c0_i32, %c0_i32_0 : i32, i32
  }
  func.func @transform_3(%arg0: i32) -> (i32, i32) {
    %c0_i32 = arith.constant 0 : i32
    %c0_i32_0 = arith.constant 0 : i32
    %c0_i32_1 = arith.constant 0 : i32
    return %c0_i32, %c0_i32_0 : i32, i32
  }
  func.func @transform_4(%arg0: i32) -> (i32, i32) {
    %c0_i32 = arith.constant 0 : i32
    %c0_i32_0 = arith.constant 0 : i32
    %c0_i32_1 = arith.constant 0 : i32
    return %c0_i32, %c0_i32_0 : i32, i32
  }
  func.func @transform_5(%arg0: i32) -> (i32, i32) {
    %c0_i32 = arith.constant 0 : i32
    %c0_i32_0 = arith.constant 0 : i32
    %c0_i32_1 = arith.constant 0 : i32
    return %c0_i32, %c0_i32_0 : i32, i32
  }
  func.func @transform_6(%arg0: i32) -> i32 {
    %c0_i32 = arith.constant 0 : i32
    %c0_i32_0 = arith.constant 0 : i32
    return %c0_i32 : i32
  }
  func.func @transform_7(%arg0: i32) -> (i32, i32) {
    %c0_i32 = arith.constant 0 : i32
    %c0_i32_0 = arith.constant 0 : i32
    return %c0_i32, %arg0 : i32, i32
  }
}

</mosaic_0001>

<llo_original>
// kernel: tpu_custom_call.1
$region0: #{tpu_custom_call.1}
  #allocation0 [shape = 'u32[]', space=smem, size = 0x4, offset = 0x4, fixed_abs, tag = 'smem constant byte address 0x4 - core index']
  #allocation1 [shape = 'u32[72,128]{1,0:T(1,128)}', space=vmem, size = 0x9000, scoped, tag = 'internal scratch']
  #allocation2 [shape = 'f32[1]{0:T(128)S(6)}', space=smem, size = 0x200, scoped, tag = 'scoped memory for tpu_custom_call.1']
  %s0 = inlined_call_operand.vmem [shape: f32[128,32], index: 0, kind: input, shape index: {}]
  %s1 = inlined_call_operand.vmem [shape: f32[32,32], index: 1, kind: input, shape index: {}]
  %s2 = inlined_call_operand.vmem [shape: f32[1,32], index: 2, kind: input, shape index: {}]
  %s3 = inlined_call_operand.vmem [shape: f32[32,16], index: 3, kind: input, shape index: {}]
  %s4 = inlined_call_operand.vmem [shape: f32[1,16], index: 4, kind: input, shape index: {}]
  %s5 = inlined_call_operand.vmem [shape: f32[1,16], index: 5, kind: input, shape index: {}]
  %s6 = inlined_call_operand.<no memory space> [shape: f32[1], index: 6, kind: input, shape index: {}]
  %s7 = inlined_call_operand.hbm [shape: f32[1,128], index: 7, kind: output, shape index: {}]
  %s8 = sld [smem:[#allocation0]]
  $region38: #{tpu_custom_call.1} parent=0
    _
  %s10 = ssub.s32 1, %s8
  %s11 = scalar_select 0, %s10, %s8
  %12 = sst [smem:[#allocation2]] %s6
  $region1: #{tpu_custom_call.1} parent=0
    #allocation3 [shape = 'u8[512]{0}', space=vmem, size = 0x400, scoped, tag = 'output window, operand 0, single buffered']
    #allocation4 [shape = 's32[1]{0}', space=sflag, size = 0x4, scoped, tag = 'scoped memory for tpu_custom_call.1']
    %13 = vsyncpa [#allocation4], 0
    // Predicated region
    $region2: #{tpu_custom_call.1} parent=1 // pred_check
      _
    $region3: #{tpu_custom_call.1} parent=1 // pred_check_branch
      %15 = sbr.rel (0) target = $region5
    $region4: #{tpu_custom_call.1} parent=1 // pred_region
      _
    $region5: #{tpu_custom_call.1} parent=1 // pred_fallthru
      _
    // Predicated region
    $region6: #{tpu_custom_call.1} parent=1 // pred_check
      _
    $region7: #{tpu_custom_call.1} parent=1 // pred_check_branch
      %17 = sbr.rel (0) target = $region9
    $region8: #{tpu_custom_call.1} parent=1 // pred_region
      _
    $region9: #{tpu_custom_call.1} parent=1 // pred_fallthru
      _
    // Predicated region
    $region10: #{tpu_custom_call.1} parent=1 // pred_check
      _
    $region11: #{tpu_custom_call.1} parent=1 // pred_check_branch
      %19 = sbr.rel (0) target = $region13
    $region12: #{tpu_custom_call.1} parent=1 // pred_region
      _
    $region13: #{tpu_custom_call.1} parent=1 // pred_fallthru
      _
    // Predicated region
    $region14: #{tpu_custom_call.1} parent=1 // pred_check
      _
    $region15: #{tpu_custom_call.1} parent=1 // pred_check_branch
      %21 = sbr.rel (0) target = $region17
    $region16: #{tpu_custom_call.1} parent=1 // pred_region
      _
    $region17: #{tpu_custom_call.1} parent=1 // pred_fallthru
      _
    // Predicated region
    $region18: #{tpu_custom_call.1} parent=1 // pred_check
      _
    $region19: #{tpu_custom_call.1} parent=1 // pred_check_branch
      %23 = sbr.rel (0) target = $region21
    $region20: #{tpu_custom_call.1} parent=1 // pred_region
      _
    $region21: #{tpu_custom_call.1} parent=1 // pred_fallthru
      _
    // Predicated region
    $region22: #{tpu_custom_call.1} parent=1 // pred_check
      _
    $region23: #{tpu_custom_call.1} parent=1 // pred_check_branch
      %25 = sbr.rel (0) target = $region25
    $region24: #{tpu_custom_call.1} parent=1 // pred_region
      _
    $region25: #{tpu_custom_call.1} parent=1 // pred_fallthru
      _
    // Predicated region
    $region26: #{tpu_custom_call.1} parent=1 // pred_check
      _
    $region27: #{tpu_custom_call.1} parent=1 // pred_check_branch
      %27 = sbr.rel (0) target = $region29
    $region28: #{tpu_custom_call.1} parent=1 // pred_region
      _
    $region29: #{tpu_custom_call.1} parent=1 // pred_fallthru
      _
    %v28 = vld [vmem:[%s0] sm:$0xff]
    %v29 = vld [vmem:[%s0 + $0x8] sm:$0xff]
    %v30 = vld [vmem:[%s0 + $0x10] sm:$0xff]
    %v31 = vld [vmem:[%s0 + $0x18] sm:$0xff]
    %v32 = vld [vmem:[%s0 + $0x20] sm:$0xff]
    %v33 = vld [vmem:[%s0 + $0x28] sm:$0xff]
    %v34 = vld [vmem:[%s0 + $0x30] sm:$0xff]
    %v35 = vld [vmem:[%s0 + $0x38] sm:$0xff]
    %v36 = vld [vmem:[%s0 + $0x40] sm:$0xff]
    %v37 = vld [vmem:[%s0 + $0x48] sm:$0xff]
    %v38 = vld [vmem:[%s0 + $0x50] sm:$0xff]
    %v39 = vld [vmem:[%s0 + $0x58] sm:$0xff]
    %v40 = vld [vmem:[%s0 + $0x60] sm:$0xff]
    %v41 = vld [vmem:[%s0 + $0x68] sm:$0xff]
    %v42 = vld [vmem:[%s0 + $0x70] sm:$0xff]
    %v43 = vld [vmem:[%s0 + $0x78] sm:$0xff]
    %v44 = vld [vmem:[%s1] sm:$0xff]
    %v45 = vld [vmem:[%s1 + $0x8] sm:$0xff]
    %v46 = vld [vmem:[%s1 + $0x10] sm:$0xff]
    %v47 = vld [vmem:[%s1 + $0x18] sm:$0xff]
    %v48 = vld [vmem:[%s2] sm:$0x1]
    %v50 = vperm.slane %v48, 0
    %vm52 = vcmask 261120
    %v54 = vsel %vm52, %v28, 0
    %v57 = vsel %vm52, %v29, 0
    %v60 = vsel %vm52, %v30, 0
    %v63 = vsel %vm52, %v31, 0
    %v66 = vsel %vm52, %v32, 0
    %v69 = vsel %vm52, %v33, 0
    %v72 = vsel %vm52, %v34, 0
    %v75 = vsel %vm52, %v35, 0
    %v78 = vsel %vm52, %v36, 0
    %v81 = vsel %vm52, %v37, 0
    %v84 = vsel %vm52, %v38, 0
    %v87 = vsel %vm52, %v39, 0
    %v90 = vsel %vm52, %v40, 0
    %v93 = vsel %vm52, %v41, 0
    %v96 = vsel %vm52, %v42, 0
    %v99 = vsel %vm52, %v43, 0
    %101 = vmatpush.msra.mxu0 0.0
    %102 = vmatpush.msra.mxu0 0.0
    %103 = vmatpush.msra.mxu0 0.0
    %104 = vmatpush.msra.mxu0 0.0
    %105 = vmatpush.msra.mxu0 0.0
    %106 = vmatpush.msra.mxu0 0.0
    %107 = vmatpush.msra.mxu0 0.0
    %108 = vmatpush.msra.mxu0 0.0
    %109 = vmatpush.msra.mxu0 0.0
    %110 = vmatpush.msra.mxu0 0.0
    %111 = vmatpush.msra.mxu0 0.0
    %112 = vmatpush.msra.mxu0 0.0
    %113 = vmatpush.msra.mxu0 %v47
    %114 = vmatpush.msra.mxu0 %v46
    %115 = vmatpush.msra.mxu0 %v45
    %116 = vmatpush.msra.mxu0 %v44
    %117 = vmatmul.f32.gmra.mxu0 %v54
    %v118 = vpop.f32.mrf.mxu0
    %v119 = vadd.f32 %v50, %v118
    %120 = vmatmul.f32.gmra.mxu0 %v57
    %v121 = vpop.f32.mrf.mxu0
    %v122 = vadd.f32 %v50, %v121
    %123 = vmatmul.f32.gmra.mxu0 %v60
    %v124 = vpop.f32.mrf.mxu0
    %v125 = vadd.f32 %v50, %v124
    %126 = vmatmul.f32.gmra.mxu0 %v63
    %v127 = vpop.f32.mrf.mxu0
    %v128 = vadd.f32 %v50, %v127
    %129 = vmatmul.f32.gmra.mxu0 %v66
    %v130 = vpop.f32.mrf.mxu0
    %v131 = vadd.f32 %v50, %v130
    %132 = vmatmul.f32.gmra.mxu0 %v69
    %v133 = vpop.f32.mrf.mxu0
    %v134 = vadd.f32 %v50, %v133
    %135 = vmatmul.f32.gmra.mxu0 %v72
    %v136 = vpop.f32.mrf.mxu0
    %v137 = vadd.f32 %v50, %v136
    %138 = vmatmul.f32.gmra.mxu0 %v75
    %v139 = vpop.f32.mrf.mxu0
    %v140 = vadd.f32 %v50, %v139
    %141 = vmatmul.f32.gmra.mxu0 %v78
    %v142 = vpop.f32.mrf.mxu0
    %v143 = vadd.f32 %v50, %v142
    %144 = vmatmul.f32.gmra.mxu0 %v81
    %v145 = vpop.f32.mrf.mxu0
    %v146 = vadd.f32 %v50, %v145
    %147 = vmatmul.f32.gmra.mxu0 %v84
    %v148 = vpop.f32.mrf.mxu0
    %v149 = vadd.f32 %v50, %v148
    %150 = vmatmul.f32.gmra.mxu0 %v87
    %v151 = vpop.f32.mrf.mxu0
    %v152 = vadd.f32 %v50, %v151
    %153 = vmatmul.f32.gmra.mxu0 %v90
    %v154 = vpop.f32.mrf.mxu0
    %v155 = vadd.f32 %v50, %v154
    %156 = vmatmul.f32.gmra.mxu0 %v93
    %v157 = vpop.f32.mrf.mxu0
    %v158 = vadd.f32 %v50, %v157
    %159 = vmatmul.f32.gmra.mxu0 %v96
    %v160 = vpop.f32.mrf.mxu0
    %v161 = vadd.f32 %v50, %v160
    %162 = vmatmul.f32.gmra.mxu0 %v99
    %v163 = vpop.f32.mrf.mxu0
    %v164 = vadd.f32 %v50, %v163
    %165 = vdwg.mxu0
    %v166 = vmax.f32 %v119, 0.0
    %v167 = vmax.f32 %v122, 0.0
    %v168 = vmax.f32 %v125, 0.0
    %v169 = vmax.f32 %v128, 0.0
    %v170 = vmax.f32 %v131, 0.0
    %v171 = vmax.f32 %v134, 0.0
    %v172 = vmax.f32 %v137, 0.0
    %v173 = vmax.f32 %v140, 0.0
    %v174 = vmax.f32 %v143, 0.0
    %v175 = vmax.f32 %v146, 0.0
    %v176 = vmax.f32 %v149, 0.0
    %v177 = vmax.f32 %v152, 0.0
    %v178 = vmax.f32 %v155, 0.0
    %v179 = vmax.f32 %v158, 0.0
    %v180 = vmax.f32 %v161, 0.0
    %v181 = vmax.f32 %v164, 0.0
    %v182 = vld [vmem:[%s3] sm:$0xff]
    %v183 = vld [vmem:[%s3 + $0x8] sm:$0xff]
    %v184 = vld [vmem:[%s3 + $0x10] sm:$0xff]
    %v185 = vld [vmem:[%s3 + $0x18] sm:$0xff]
    %v186 = vld [vmem:[%s4] sm:$0x1]
    %v188 = vperm.slane %v186, 0
    %v191 = vsel %vm52, %v166, 0
    %v194 = vsel %vm52, %v167, 0
    %v197 = vsel %vm52, %v168, 0
    %v200 = vsel %vm52, %v169, 0
    %v203 = vsel %vm52, %v170, 0
    %v206 = vsel %vm52, %v171, 0
    %v209 = vsel %vm52, %v172, 0
    %v212 = vsel %vm52, %v173, 0
    %v215 = vsel %vm52, %v174, 0
    %v218 = vsel %vm52, %v175, 0
    %v221 = vsel %vm52, %v176, 0
    %v224 = vsel %vm52, %v177, 0
    %v227 = vsel %vm52, %v178, 0
    %v230 = vsel %vm52, %v179, 0
    %v233 = vsel %vm52, %v180, 0
    %v236 = vsel %vm52, %v181, 0
    %238 = vmatpush.msra.mxu0 0.0
    %239 = vmatpush.msra.mxu0 0.0
    %240 = vmatpush.msra.mxu0 0.0
    %241 = vmatpush.msra.mxu0 0.0
    %242 = vmatpush.msra.mxu0 0.0
    %243 = vmatpush.msra.mxu0 0.0
    %244 = vmatpush.msra.mxu0 0.0
    %245 = vmatpush.msra.mxu0 0.0
    %246 = vmatpush.msra.mxu0 0.0
    %247 = vmatpush.msra.mxu0 0.0
    %248 = vmatpush.msra.mxu0 0.0
    %249 = vmatpush.msra.mxu0 0.0
    %250 = vmatpush.msra.mxu0 %v185
    %251 = vmatpush.msra.mxu0 %v184
    %252 = vmatpush.msra.mxu0 %v183
    %253 = vmatpush.msra.mxu0 %v182
    %254 = vmatmul.f32.gmra.mxu0 %v191
    %v255 = vpop.f32.mrf.mxu0
    %v256 = vadd.f32 %v188, %v255
    %257 = vmatmul.f32.gmra.mxu0 %v194
    %v258 = vpop.f32.mrf.mxu0
    %v259 = vadd.f32 %v188, %v258
    %260 = vmatmul.f32.gmra.mxu0 %v197
    %v261 = vpop.f32.mrf.mxu0
    %v262 = vadd.f32 %v188, %v261
    %263 = vmatmul.f32.gmra.mxu0 %v200
    %v264 = vpop.f32.mrf.mxu0
    %v265 = vadd.f32 %v188, %v264
    %266 = vmatmul.f32.gmra.mxu0 %v203
    %v267 = vpop.f32.mrf.mxu0
    %v268 = vadd.f32 %v188, %v267
    %269 = vmatmul.f32.gmra.mxu0 %v206
    %v270 = vpop.f32.mrf.mxu0
    %v271 = vadd.f32 %v188, %v270
    %272 = vmatmul.f32.gmra.mxu0 %v209
    %v273 = vpop.f32.mrf.mxu0
    %v274 = vadd.f32 %v188, %v273
    %275 = vmatmul.f32.gmra.mxu0 %v212
    %v276 = vpop.f32.mrf.mxu0
    %v277 = vadd.f32 %v188, %v276
    %278 = vmatmul.f32.gmra.mxu0 %v215
    %v279 = vpop.f32.mrf.mxu0
    %v280 = vadd.f32 %v188, %v279
    %281 = vmatmul.f32.gmra.mxu0 %v218
    %v282 = vpop.f32.mrf.mxu0
    %v283 = vadd.f32 %v188, %v282
    %284 = vmatmul.f32.gmra.mxu0 %v221
    %v285 = vpop.f32.mrf.mxu0
    %v286 = vadd.f32 %v188, %v285
    %287 = vmatmul.f32.gmra.mxu0 %v224
    %v288 = vpop.f32.mrf.mxu0
    %v289 = vadd.f32 %v188, %v288
    %290 = vmatmul.f32.gmra.mxu0 %v227
    %v291 = vpop.f32.mrf.mxu0
    %v292 = vadd.f32 %v188, %v291
    %293 = vmatmul.f32.gmra.mxu0 %v230
    %v294 = vpop.f32.mrf.mxu0
    %v295 = vadd.f32 %v188, %v294
    %296 = vmatmul.f32.gmra.mxu0 %v233
    %v297 = vpop.f32.mrf.mxu0
    %v298 = vadd.f32 %v188, %v297
    %299 = vmatmul.f32.gmra.mxu0 %v236
    %v300 = vpop.f32.mrf.mxu0
    %v301 = vadd.f32 %v188, %v300
    %302 = vdwg.mxu0
    %v303 = vmax.f32 %v256, 0.0
    %v304 = vmax.f32 %v259, 0.0
    %v305 = vmax.f32 %v262, 0.0
    %v306 = vmax.f32 %v265, 0.0
    %v307 = vmax.f32 %v268, 0.0
    %v308 = vmax.f32 %v271, 0.0
    %v309 = vmax.f32 %v274, 0.0
    %v310 = vmax.f32 %v277, 0.0
    %v311 = vmax.f32 %v280, 0.0
    %v312 = vmax.f32 %v283, 0.0
    %v313 = vmax.f32 %v286, 0.0
    %v314 = vmax.f32 %v289, 0.0
    %v315 = vmax.f32 %v292, 0.0
    %v316 = vmax.f32 %v295, 0.0
    %v317 = vmax.f32 %v298, 0.0
    %v318 = vmax.f32 %v301, 0.0
    %v319 = vld [vmem:[%s5] sm:$0x1]
    %v321 = vperm.slane %v319, 0
    %v323 = vmul.f32 %v303, %v321
    %v324 = vmul.f32 %v304, %v321
    %v325 = vmul.f32 %v305, %v321
    %v326 = vmul.f32 %v306, %v321
    %v327 = vmul.f32 %v307, %v321
    %v328 = vmul.f32 %v308, %v321
    %v329 = vmul.f32 %v309, %v321
    %v330 = vmul.f32 %v310, %v321
    %v331 = vmul.f32 %v311, %v321
    %v332 = vmul.f32 %v312, %v321
    %v333 = vmul.f32 %v313, %v321
    %v334 = vmul.f32 %v314, %v321
    %v335 = vmul.f32 %v315, %v321
    %v336 = vmul.f32 %v316, %v321
    %v337 = vmul.f32 %v317, %v321
    %v338 = vmul.f32 %v318, %v321
    %vm339 = vcmask 130048
    %v340 = vsel %vm339, %v323, 0.0
    %341 = vadd.xlane.f32.xlu0 %v340
    %v342 = vpop.xlane.xlu0 %341
    %v343 = vsel %vm339, %v324, 0.0
    %344 = vadd.xlane.f32.xlu0 %v343
    %v345 = vpop.xlane.xlu0 %344
    %v346 = vsel %vm339, %v325, 0.0
    %347 = vadd.xlane.f32.xlu0 %v346
    %v348 = vpop.xlane.xlu0 %347
    %v349 = vsel %vm339, %v326, 0.0
    %350 = vadd.xlane.f32.xlu0 %v349
    %v351 = vpop.xlane.xlu0 %350
    %v352 = vsel %vm339, %v327, 0.0
    %353 = vadd.xlane.f32.xlu0 %v352
    %v354 = vpop.xlane.xlu0 %353
    %v355 = vsel %vm339, %v328, 0.0
    %356 = vadd.xlane.f32.xlu0 %v355
    %v357 = vpop.xlane.xlu0 %356
    %v358 = vsel %vm339, %v329, 0.0
    %359 = vadd.xlane.f32.xlu0 %v358
    %v360 = vpop.xlane.xlu0 %359
    %v361 = vsel %vm339, %v330, 0.0
    %362 = vadd.xlane.f32.xlu0 %v361
    %v363 = vpop.xlane.xlu0 %362
    %v364 = vsel %vm339, %v331, 0.0
    %365 = vadd.xlane.f32.xlu0 %v364
    %v366 = vpop.xlane.xlu0 %365
    %v367 = vsel %vm339, %v332, 0.0
    %368 = vadd.xlane.f32.xlu0 %v367
    %v369 = vpop.xlane.xlu0 %368
    %v370 = vsel %vm339, %v333, 0.0
    %371 = vadd.xlane.f32.xlu0 %v370
    %v372 = vpop.xlane.xlu0 %371
    %v373 = vsel %vm339, %v334, 0.0
    %374 = vadd.xlane.f32.xlu0 %v373
    %v375 = vpop.xlane.xlu0 %374
    %v376 = vsel %vm339, %v335, 0.0
    %377 = vadd.xlane.f32.xlu0 %v376
    %v378 = vpop.xlane.xlu0 %377
    %v379 = vsel %vm339, %v336, 0.0
    %380 = vadd.xlane.f32.xlu0 %v379
    %v381 = vpop.xlane.xlu0 %380
    %v382 = vsel %vm339, %v337, 0.0
    %383 = vadd.xlane.f32.xlu0 %v382
    %v384 = vpop.xlane.xlu0 %383
    %v385 = vsel %vm339, %v338, 0.0
    %386 = vadd.xlane.f32.xlu0 %v385
    %v387 = vpop.xlane.xlu0 %386
    %s388 = sld [smem:[#allocation2]]
    %v389 = vstv %s388
    %v390 = vadd.f32 %v342, %v389
    %v391 = vadd.f32 %v345, %v389
    %v392 = vadd.f32 %v348, %v389
    %v393 = vadd.f32 %v351, %v389
    %v394 = vadd.f32 %v354, %v389
    %v395 = vadd.f32 %v357, %v389
    %v396 = vadd.f32 %v360, %v389
    %v397 = vadd.f32 %v363, %v389
    %v398 = vadd.f32 %v366, %v389
    %v399 = vadd.f32 %v369, %v389
    %v400 = vadd.f32 %v372, %v389
    %v401 = vadd.f32 %v375, %v389
    %v402 = vadd.f32 %v378, %v389
    %v403 = vadd.f32 %v381, %v389
    %v404 = vadd.f32 %v384, %v389
    %v405 = vadd.f32 %v387, %v389
    %v406 = vmax.f32 %v390, 0.0
    %v407 = vmax.f32 %v391, 0.0
    %v408 = vmax.f32 %v392, 0.0
    %v409 = vmax.f32 %v393, 0.0
    %v410 = vmax.f32 %v394, 0.0
    %v411 = vmax.f32 %v395, 0.0
    %v412 = vmax.f32 %v396, 0.0
    %v413 = vmax.f32 %v397, 0.0
    %v414 = vmax.f32 %v398, 0.0
    %v415 = vmax.f32 %v399, 0.0
    %v416 = vmax.f32 %v400, 0.0
    %v417 = vmax.f32 %v401, 0.0
    %v418 = vmax.f32 %v402, 0.0
    %v419 = vmax.f32 %v403, 0.0
    %v420 = vmax.f32 %v404, 0.0
    %v421 = vmax.f32 %v405, 0.0
    %422 = vxpose.xlu0.b32.start [1/16] %v406, 128
    %423 = vxpose.xlu0.b32.cont [2/16] %v407, 128
    %424 = vxpose.xlu0.b32.cont [3/16] %v408, 128
    %425 = vxpose.xlu0.b32.cont [4/16] %v409, 128
    %426 = vxpose.xlu0.b32.cont [5/16] %v410, 128
    %427 = vxpose.xlu0.b32.cont [6/16] %v411, 128
    %428 = vxpose.xlu0.b32.cont [7/16] %v412, 128
    %429 = vxpose.xlu0.b32.cont [8/16] %v413, 128
    %430 = vxpose.xlu0.b32.cont [9/16] %v414, 128
    %431 = vxpose.xlu0.b32.cont [10/16] %v415, 128
    %432 = vxpose.xlu0.b32.cont [11/16] %v416, 128
    %433 = vxpose.xlu0.b32.cont [12/16] %v417, 128
    %434 = vxpose.xlu0.b32.cont [13/16] %v418, 128
    %435 = vxpose.xlu0.b32.cont [14/16] %v419, 128
    %436 = vxpose.xlu0.b32.cont [15/16] %v420, 128
    %437 = vxpose.xlu0.b32.end [16/16] %v421, 128
    %v438 = vpop.trf.xlu0
    %v439 = vpop.trf.xlu0
    %v440 = vpop.trf.xlu0
    %v441 = vpop.trf.xlu0
    %v442 = vpop.trf.xlu0
    %v443 = vpop.trf.xlu0
    %v444 = vpop.trf.xlu0
    %v445 = vpop.trf.xlu0
    %v446 = vpop.trf.xlu0
    %v447 = vpop.trf.xlu0
    %v448 = vpop.trf.xlu0
    %v449 = vpop.trf.xlu0
    %v450 = vpop.trf.xlu0
    %v451 = vpop.trf.xlu0
    %v452 = vpop.trf.xlu0
    %v453 = vpop.trf.xlu0
    %454 = vst [vmem:[#allocation3] sm:$0x1] %v438
    // Predicated region
    $region30: #{tpu_custom_call.1} parent=1 // pred_check
      _
    $region31: #{tpu_custom_call.1} parent=1 // pred_check_branch
      %456 = sbr.rel (0) target = $region33
    $region32: #{tpu_custom_call.1} parent=1 // pred_region
      %458 = vsyncadd [#allocation4], 0
      %s460 = sshll.u32 [#allocation3], 4
      %s461 = int_to_ptr.vmem [resolvable:$true] %s460
      %s462 = sshll.u32 %s7, 4
      %s463 = int_to_ptr.hbm [resolvable:$true] %s462
      %465 = dma.vmem_to_hbm [thread:$0]  %s461, 16, %s463, [#allocation4]
    $region33: #{tpu_custom_call.1} parent=1 // pred_fallthru
      _
    // Predicated region
    $region34: #{tpu_custom_call.1} parent=1 // pred_check
      _
    $region35: #{tpu_custom_call.1} parent=1 // pred_check_branch
      %467 = sbr.rel (0) target = $region37
    $region36: #{tpu_custom_call.1} parent=1 // pred_region
      %469 = dma.done [#allocation4], 16
    $region37: #{tpu_custom_call.1} parent=1 // pred_fallthru
      _
    %470 = vsyncpa [#allocation4], 1

</llo_original>
